<compile_context>
chip_gen: v5e
topology: v5e:2x2
jax: 0.10.0
libtpu: 0.0.40
codegen_flags: <defaults>
</compile_context>

<pallas_src>
import functools

import jax
import jax.numpy as jnp
from jax import lax
from jax.experimental import pallas as pl
from jax.experimental.pallas import tpu as pltpu


_TK_CAP = 4096                     # max K-slab width (columns) per grid step
_VMEM_BUDGET = 40 * 1024 * 1024    # sizing budget for double-buffered tiles
_VMEM_LIMIT = 48 * 1024 * 1024     # explicit scoped-VMEM limit (v5e/v6e/v7x safe)


def _round_up(x, m):
    return (x + m - 1) // m * m


def _cdiv(a, b):
    return -(-a // b)


# ---------------------------------------------------------------------------
# Resident-gram kernel: full (M, M) accumulator, stream one K slab per step.
# ---------------------------------------------------------------------------
def _gram_resident_kernel(f_ref, g_ref, *, inv_norm):
    """Accumulate G += slab @ slab.T for one (M, tk) slab of the feature map.

    Grid = (P, gk): axis 0 is an independent ("parallel") split of the K
    reduction (each p owns a disjoint K range and its own (M, M) partial gram,
    summed in JAX afterwards) so v7x's second TensorCore has work; axis 1 is
    the K reduction ("arbitrary", last).  The f32 output block is the
    accumulator and stays resident across axis 1.
    """
    k = pl.program_id(1)

    @pl.when(k == 0)
    def _():
        g_ref[...] = jnp.zeros_like(g_ref)

    slab = f_ref[...]
    # Contract axis 1 of the slab with itself on the MXU (no explicit .T).
    g_ref[...] += lax.dot_general(
        slab, slab,
        dimension_numbers=(((1,), (1,)), ((), ())),
        preferred_element_type=jnp.float32,
    )

    @pl.when(k == pl.num_programs(1) - 1)
    def _():
        g_ref[...] *= inv_norm


def _pick_resident_slab(M, K):
    """Return (tk, gk) for the resident-gram kernel, or None if M is too big."""
    out_bytes = 2 * M * M * 4                    # (M, M) f32 output, 2 buffers
    avail = _VMEM_BUDGET - out_bytes
    if avail <= 0:
        return None
    tk_cap = min(_TK_CAP, (avail // (2 * M * 4)) // 128 * 128)
    if tk_cap < 128:
        return None
    if K <= tk_cap:
        return K, 1                              # whole K in one slab, no padding
    gk = _cdiv(K, tk_cap)
    tk = _round_up(_cdiv(K, gk), 128)
    return tk, gk


def _gram_resident(feat, inv_norm, tk, gk):
    M, K = feat.shape
    Kp = tk * gk
    if Kp != K:
        # Zero-pad the ragged K tail only (zeros contribute nothing to the gram).
        feat = jnp.pad(feat, ((0, 0), (0, Kp - K)))

    # 2-way parallel split of the K reduction when it divides evenly: gives the
    # second TensorCore on v7x parallel grid extent; no-op elsewhere.
    p_split = 2 if (gk >= 2 and gk % 2 == 0) else 1
    gk_per = gk // p_split

    kernel = functools.partial(_gram_resident_kernel, inv_norm=inv_norm)
    cost = pl.CostEstimate(
        flops=2 * M * M * Kp,
        transcendentals=0,
        bytes_accessed=M * Kp * 4 + p_split * M * M * 4,
    )
    parts = pl.pallas_call(
        kernel,
        out_shape=jax.ShapeDtypeStruct((p_split, M, M), jnp.float32),
        grid_spec=pltpu.PrefetchScalarGridSpec(
            num_scalar_prefetch=0,
            grid=(p_split, gk_per),
            in_specs=[
                pl.BlockSpec((M, tk), lambda p, k: (0, p * gk_per + k)),
            ],
            out_specs=pl.BlockSpec(
                (pl.Squeezed(), M, M), lambda p, k: (p, 0, 0)
            ),
        ),
        compiler_params=pltpu.CompilerParams(
            dimension_semantics=("parallel", "arbitrary"),
            vmem_limit_bytes=_VMEM_LIMIT,
        ),
        cost_estimate=cost,
    )(feat)
    return parts[0] if p_split == 1 else parts.sum(axis=0)


# ---------------------------------------------------------------------------
# Fallback for very large M: 3-D tiled grid, output tile = resident accumulator.
# ---------------------------------------------------------------------------
def _gram_tiled_kernel(lhs_ref, rhs_ref, g_ref, *, inv_norm):
    k = pl.program_id(2)

    @pl.when(k == 0)
    def _():
        g_ref[...] = jnp.zeros_like(g_ref)

    g_ref[...] += lax.dot_general(
        lhs_ref[...], rhs_ref[...],
        dimension_numbers=(((1,), (1,)), ((), ())),
        preferred_element_type=jnp.float32,
    )

    @pl.when(k == pl.num_programs(2) - 1)
    def _():
        g_ref[...] *= inv_norm


def _gram_tiled(feat, inv_norm):
    # TODO(synk): exploit gram symmetry (upper-triangle (i, j) pairs via
    # scalar-prefetched index arrays) to halve MXU work + DMA for very large M.
    M, K = feat.shape
    tm = 256                                   # full MXU rows on v6e/v7x
    Mp = _round_up(M, tm)
    avail = _VMEM_BUDGET - 2 * tm * tm * 4
    tk_cap = min(_TK_CAP, (avail // (4 * tm * 4)) // 128 * 128)
    gk = _cdiv(K, tk_cap)
    tk = _round_up(_cdiv(K, gk), 128)
    Kp = tk * gk
    feat_p = feat if (Mp == M and Kp == K) else jnp.pad(
        feat, ((0, Mp - M), (0, Kp - K)))

    kernel = functools.partial(_gram_tiled_kernel, inv_norm=inv_norm)
    nm = Mp // tm
    cost = pl.CostEstimate(
        flops=2 * Mp * Mp * Kp,
        transcendentals=0,
        bytes_accessed=2 * nm * Mp * Kp * 4 + Mp * Mp * 4,
    )
    G_pad = pl.pallas_call(
        kernel,
        out_shape=jax.ShapeDtypeStruct((Mp, Mp), jnp.float32),
        grid_spec=pltpu.PrefetchScalarGridSpec(
            num_scalar_prefetch=0,
            grid=(nm, nm, gk),
            in_specs=[
                pl.BlockSpec((tm, tk), lambda i, j, k: (i, k)),
                pl.BlockSpec((tm, tk), lambda i, j, k: (j, k)),
            ],
            out_specs=pl.BlockSpec((tm, tm), lambda i, j, k: (i, j)),
        ),
        compiler_params=pltpu.CompilerParams(
            dimension_semantics=("parallel", "parallel", "arbitrary"),
            vmem_limit_bytes=_VMEM_LIMIT,
        ),
        cost_estimate=cost,
    )(feat_p, feat_p)
    return G_pad[:M, :M]


# ---------------------------------------------------------------------------
# Public API, matching the PyTorch reference.
# ---------------------------------------------------------------------------
@jax.jit
def gram_matrix(x):
    """JAX/Pallas equivalent of the reference gram_matrix (channels-last view)."""
    B, H, W, F = x.shape
    M, K = B * H, W * F
    feat = x.reshape(M, K)
    inv_norm = 1.0 / float(M * K)

    # Note: a bf16 input cast would halve HBM traffic (kernel is HBM-bound) but
    # drifts past the reference f32 1e-5 tolerance; inputs are kept f32.
    slab = _pick_resident_slab(M, K)
    if slab is not None:
        tk, gk = slab
        return _gram_resident(feat, inv_norm, tk, gk)
    return _gram_tiled(feat, inv_norm)


class StyleLoss:
    """JAX/Pallas equivalent of the PyTorch StyleLoss module."""

    def __init__(self, target_feature):
        # Gram-only kernel call: no dummy target DMA and no dead MSE work.
        self.target = jax.lax.stop_gradient(gram_matrix(target_feature))
        # F.mse_loss(self.target, self.target) == 0
        self.loss = jnp.float32(0.0)

    def __call__(self, x):
        G = gram_matrix(x)
        # mse_loss with default 'mean' reduction over the (M, M) gram matrix.
        # Trivial elementwise op, done in plain JAX (the target gram never sits
        # in VMEM during the kernel's reduction).
        self.loss = jnp.mean(jnp.square(G - self.target))
        return x  # forward returns the input unchanged


def _gram_ref(x):
    B, H, W, F = x.shape
    feat = x.reshape(B * H, W * F).astype(jnp.float32)
    return (feat @ feat.T) / float(B * H * W * F)


if __name__ == "__main__":
    key = jax.random.PRNGKey(0)
    k_tgt, k_in, k_a, k_b = jax.random.split(key, 4)

    # Primary small shapes: M = B*H = 16, K = W*F = 512 -> single-slab grid.
    B, H, W, F = 2, 8, 16, 32
    target_feature = jax.random.normal(k_tgt, (B, H, W, F), dtype=jnp.float32)
    x = jax.random.normal(k_in, (B, H, W, F), dtype=jnp.float32)

    module = StyleLoss(target_feature)
    out = jax.block_until_ready(module(x))
    loss = jax.block_until_ready(module.loss)

    # Pure-JAX reference check of the forward semantics.
    G_ref = _gram_ref(x)
    T_ref = _gram_ref(target_feature)
    loss_ref = jnp.mean((G_ref - T_ref) ** 2)
    assert jnp.allclose(out, x), "forward must pass the input through unchanged"
    assert jnp.allclose(module.target, T_ref, rtol=1e-5, atol=1e-5)
    assert jnp.allclose(loss, loss_ref, rtol=1e-5, atol=1e-6), (loss, loss_ref)

    # Extra coverage: K = 16384 -> 4 K-slabs, 2-way parallel split, 2-step
    # accumulation per split, no padding.
    xa = jax.random.normal(k_a, (2, 8, 16, 1024), dtype=jnp.float32)
    assert jnp.allclose(gram_matrix(xa), _gram_ref(xa), rtol=1e-4, atol=1e-5)

    # Extra coverage: ragged K (K = 9000) -> 3 slabs, zero-padded tail, P = 1.
    xb = jax.random.normal(k_b, (1, 16, 15, 600), dtype=jnp.float32)
    assert jnp.allclose(gram_matrix(xb), _gram_ref(xb), rtol=1e-4, atol=1e-5)

    print("KERNEL_OK")
</pallas_src>

<mosaic_0001>
module attributes {stable_mosaic.version = 11 : i64} {
  func.func @_gram_resident_kernel(%arg0: i32, %arg1: i32, %arg2: memref<16x512xf32, #tpu.memory_space<vmem>>, %arg3: memref<1x16x16xf32, #tpu.memory_space<vmem>>) attributes {dimension_semantics = [#tpu.dimension_semantics<parallel>, #tpu.dimension_semantics<arbitrary>], iteration_bounds = array<i64: 1, 1>, scalar_prefetch = 0 : i64, scratch_operands = 0 : i64, tpu.core_type = #tpu.core_type<tc>, window_params = [{transform_indices = @transform_0, window_bounds = array<i64: 16, 512>}, {transform_indices = @transform_1, window_bounds = array<i64: 1, 16, 16>}]} {
    %c0_i32 = arith.constant 0 : i32
    %0 = arith.cmpi eq, %arg1, %c0_i32 : i32
    %1 = arith.extui %0 : i1 to i32
    %c0_i32_0 = arith.constant 0 : i32
    %2 = arith.cmpi ne, %1, %c0_i32_0 : i32
    scf.if %2 {
      %cst_10 = arith.constant 0.000000e+00 : f32
      %14 = vector.broadcast %cst_10 : f32 to vector<16x16xf32>
      %c0_11 = arith.constant 0 : index
      %c0_12 = arith.constant 0 : index
      %c0_13 = arith.constant 0 : index
      %15 = vector.load %arg3[%c0_11, %c0_12, %c0_13] : memref<1x16x16xf32, #tpu.memory_space<vmem>>, vector<1x16x16xf32>
      %16 = vector.shape_cast %15 : vector<1x16x16xf32> to vector<16x16xf32>
      %17 = vector.shape_cast %14 : vector<16x16xf32> to vector<1x16x16xf32>
      tpu.vector_store %arg3[%c0_11, %c0_12, %c0_13], %17 {strides = array<i32>} : memref<1x16x16xf32, #tpu.memory_space<vmem>>, vector<1x16x16xf32>,
    } else {
    }
    %c0 = arith.constant 0 : index
    %c0_1 = arith.constant 0 : index
    %3 = vector.load %arg2[%c0, %c0_1] : memref<16x512xf32, #tpu.memory_space<vmem>>, vector<16x512xf32>
    %c0_2 = arith.constant 0 : index
    %c0_3 = arith.constant 0 : index
    %c0_4 = arith.constant 0 : index
    %4 = vector.load %arg3[%c0_2, %c0_3, %c0_4] : memref<1x16x16xf32, #tpu.memory_space<vmem>>, vector<1x16x16xf32>
    %5 = vector.shape_cast %4 : vector<1x16x16xf32> to vector<16x16xf32>
    %cst = arith.constant dense<0.000000e+00> : vector<16x16xf32>
    %6 = tpu.matmul %3, %3, %cst {dimension_numbers = #tpu.dot_dimension_numbers<[1], [1], [0], [0], [0, 0, 1, 0], [], []>} : vector<16x512xf32>, vector<16x512xf32>, vector<16x16xf32> -> vector<16x16xf32>
    %7 = arith.addf %5, %6 : vector<16x16xf32>
    %c0_5 = arith.constant 0 : index
    %c0_6 = arith.constant 0 : index
    %c0_7 = arith.constant 0 : index
    %8 = vector.load %arg3[%c0_5, %c0_6, %c0_7] : memref<1x16x16xf32, #tpu.memory_space<vmem>>, vector<1x16x16xf32>
    %9 = vector.shape_cast %8 : vector<1x16x16xf32> to vector<16x16xf32>
    %10 = vector.shape_cast %7 : vector<16x16xf32> to vector<1x16x16xf32>
    tpu.vector_store %arg3[%c0_5, %c0_6, %c0_7], %10 {strides = array<i32>} : memref<1x16x16xf32, #tpu.memory_space<vmem>>, vector<1x16x16xf32>,
    %c0_i32_8 = arith.constant 0 : i32
    %11 = arith.cmpi eq, %arg1, %c0_i32_8 : i32
    %12 = arith.extui %11 : i1 to i32
    %c0_i32_9 = arith.constant 0 : i32
    %13 = arith.cmpi ne, %12, %c0_i32_9 : i32
    scf.if %13 {
      %c0_10 = arith.constant 0 : index
      %c0_11 = arith.constant 0 : index
      %c0_12 = arith.constant 0 : index
      %14 = vector.load %arg3[%c0_10, %c0_11, %c0_12] : memref<1x16x16xf32, #tpu.memory_space<vmem>>, vector<1x16x16xf32>
      %15 = vector.shape_cast %14 : vector<1x16x16xf32> to vector<16x16xf32>
      %cst_13 = arith.constant 1.22070313E-4 : f32
      %16 = vector.broadcast %cst_13 : f32 to vector<16x16xf32>
      %17 = arith.mulf %15, %16 : vector<16x16xf32>
      %c0_14 = arith.constant 0 : index
      %c0_15 = arith.constant 0 : index
      %c0_16 = arith.constant 0 : index
      %18 = vector.load %arg3[%c0_14, %c0_15, %c0_16] : memref<1x16x16xf32, #tpu.memory_space<vmem>>, vector<1x16x16xf32>
      %19 = vector.shape_cast %18 : vector<1x16x16xf32> to vector<16x16xf32>
      %20 = vector.shape_cast %17 : vector<16x16xf32> to vector<1x16x16xf32>
      tpu.vector_store %arg3[%c0_14, %c0_15, %c0_16], %20 {strides = array<i32>} : memref<1x16x16xf32, #tpu.memory_space<vmem>>, vector<1x16x16xf32>,
    } else {
    }
    return
  }
  func.func @transform_0(%arg0: i32, %arg1: i32) -> (i32, i32) {
    %c1_i32 = arith.constant 1 : i32
    %0 = arith.muli %arg0, %c1_i32 : i32
    %1 = arith.addi %0, %arg1 : i32
    %c0_i32 = arith.constant 0 : i32
    %c0_i32_0 = arith.constant 0 : i32
    return %c0_i32, %1 : i32, i32
  }
  func.func @transform_1(%arg0: i32, %arg1: i32) -> (i32, i32, i32) {
    %c0_i32 = arith.constant 0 : i32
    %c0_i32_0 = arith.constant 0 : i32
    %c0_i32_1 = arith.constant 0 : i32
    return %arg0, %c0_i32, %c0_i32_0 : i32, i32, i32
  }
}

</mosaic_0001>

<llo_original>
// kernel: gram_matrix.1
$region0: #{gram_matrix.1}
  #allocation0 [shape = 'u32[]', space=smem, size = 0x4, offset = 0x4, fixed_abs, tag = 'smem constant byte address 0x4 - core index']
  #allocation1 [shape = 'u32[72,128]{1,0:T(1,128)}', space=vmem, size = 0x9000, scoped, tag = 'internal scratch']
  %s0 = inlined_call_operand.vmem [shape: f32[16,512], index: 0, kind: input, shape index: {}]
  %s1 = inlined_call_operand.hbm [shape: f32[1,16,16], index: 1, kind: output, shape index: {}]
  %s2 = sld [smem:[#allocation0]]
  $region22: #{gram_matrix.1} parent=0
    _
  %s4 = ssub.s32 1, %s2
  %s5 = scalar_select 0, %s4, %s2
  $region1: #{gram_matrix.1} parent=0
    #allocation2 [shape = 'u8[8192]{0}', space=vmem, size = 0x2000, scoped, tag = 'output window, operand 0, single buffered']
    #allocation3 [shape = 's32[1]{0}', space=sflag, size = 0x4, scoped, tag = 'scoped memory for gram_matrix.1']
    %6 = vsyncpa [#allocation3], 0
    // Predicated region
    $region2: #{gram_matrix.1} parent=1 // pred_check
      _
    $region3: #{gram_matrix.1} parent=1 // pred_check_branch
      %8 = sbr.rel (0) target = $region5
    $region4: #{gram_matrix.1} parent=1 // pred_region
      %s9 = sadd.s32 0, 0
      %s10 = smul.u32 4, %s9
      %p11 = scmp.lt.s32.totalorder %s10, 3
      %s12 = scalar_select %p11, %s10, 3
      %s13 = smul.addr %s12, 8
      %s14 = scalar_lea.vmem %s0, %s13
      %s15 = sadd.s32 0, 0
      %s16 = smul.u32 4, %s15
    $region5: #{gram_matrix.1} parent=1 // pred_fallthru
      _
    %s17 = sadd.s32 0, 0
    %s18 = smul.u32 4, %s17
    %p19 = scmp.lt.s32.totalorder %s18, 3
    %s20 = scalar_select %p19, %s18, 3
    %s21 = smul.addr %s20, 8
    %s22 = scalar_lea.vmem %s0, %s21
    %s23 = sadd.s32 0, 0
    %s24 = smul.u32 4, %s23
    %p25 = scmp.lt.s32.totalorder %s24, 3
    %s26 = scalar_select %p25, %s24, 3
    %s27 = smul.addr %s26, 8
    %s28 = scalar_lea.vmem %s0, %s27
    %s29 = sadd.s32 0, 0
    %s30 = smul.u32 4, %s29
    %p31 = scmp.eq.s32.totalorder 0, 0
    // Predicated region
    $region6: #{gram_matrix.1} parent=1 // pred_check
      %p32 = pneg %p31
    $region7: #{gram_matrix.1} parent=1 // pred_check_branch
      %34 = sbr.rel (%p32) target = $region9
    $region8: #{gram_matrix.1} parent=1 // pred_region
      %vm35 = vcmask 130048
      %36 = vst.msk [vmem:[#allocation2] sm:$0xff] %vm35, 0.0
      %37 = vst.msk [vmem:[#allocation2 + $0x8] sm:$0xff] %vm35, 0.0
    $region9: #{gram_matrix.1} parent=1 // pred_fallthru
      _
    %v38 = vld [vmem:[%s28] sm:$0xff]
    %v39 = vld [vmem:[%s28 + $0x8] sm:$0xff]
    %v40 = vld [vmem:[%s28 + $0x10] sm:$0xff]
    %v41 = vld [vmem:[%s28 + $0x18] sm:$0xff]
    %v42 = vld [vmem:[%s28 + $0x20] sm:$0xff]
    %v43 = vld [vmem:[%s28 + $0x28] sm:$0xff]
    %v44 = vld [vmem:[%s28 + $0x30] sm:$0xff]
    %v45 = vld [vmem:[%s28 + $0x38] sm:$0xff]
    %v46 = vld [vmem:[#allocation2] sm:$0xff]
    %v47 = vld [vmem:[#allocation2 + $0x8] sm:$0xff]
    %48 = vmatpush.xpose.msra.mxu0 0.0
    %49 = vmatpush.xpose.msra.mxu0 0.0
    %50 = vmatpush.xpose.msra.mxu0 0.0
    %51 = vmatpush.xpose.msra.mxu0 0.0
    %52 = vmatpush.xpose.msra.mxu0 0.0
    %53 = vmatpush.xpose.msra.mxu0 0.0
    %54 = vmatpush.xpose.msra.mxu0 0.0
    %55 = vmatpush.xpose.msra.mxu0 0.0
    %56 = vmatpush.xpose.msra.mxu0 0.0
    %57 = vmatpush.xpose.msra.mxu0 0.0
    %58 = vmatpush.xpose.msra.mxu0 0.0
    %59 = vmatpush.xpose.msra.mxu0 0.0
    %60 = vmatpush.xpose.msra.mxu0 0.0
    %61 = vmatpush.xpose.msra.mxu0 0.0
    %62 = vmatpush.xpose.msra.mxu0 %v42
    %63 = vmatpush.xpose.msra.mxu0 %v38
    %64 = vmatmul.f32.gmra.mxu0 %v38
    %v65 = vpop.f32.mrf.mxu0
    %v66 = vadd.f32 0.0, %v65
    %67 = vmatmul.f32.gmra.mxu0 %v42
    %v68 = vpop.f32.mrf.mxu0
    %v69 = vadd.f32 0.0, %v68
    %70 = vdwg.mxu0
    %71 = vmatpush.xpose.msra.mxu0 0.0
    %72 = vmatpush.xpose.msra.mxu0 0.0
    %73 = vmatpush.xpose.msra.mxu0 0.0
    %74 = vmatpush.xpose.msra.mxu0 0.0
    %75 = vmatpush.xpose.msra.mxu0 0.0
    %76 = vmatpush.xpose.msra.mxu0 0.0
    %77 = vmatpush.xpose.msra.mxu0 0.0
    %78 = vmatpush.xpose.msra.mxu0 0.0
    %79 = vmatpush.xpose.msra.mxu0 0.0
    %80 = vmatpush.xpose.msra.mxu0 0.0
    %81 = vmatpush.xpose.msra.mxu0 0.0
    %82 = vmatpush.xpose.msra.mxu0 0.0
    %83 = vmatpush.xpose.msra.mxu0 0.0
    %84 = vmatpush.xpose.msra.mxu0 0.0
    %85 = vmatpush.xpose.msra.mxu0 %v43
    %86 = vmatpush.xpose.msra.mxu0 %v39
    %87 = vmatmul.f32.gmra.mxu0 %v39
    %v88 = vpop.f32.mrf.mxu0
    %v89 = vadd.f32 %v66, %v88
    %90 = vmatmul.f32.gmra.mxu0 %v43
    %v91 = vpop.f32.mrf.mxu0
    %v92 = vadd.f32 %v69, %v91
    %93 = vdwg.mxu0
    %94 = vmatpush.xpose.msra.mxu0 0.0
    %95 = vmatpush.xpose.msra.mxu0 0.0
    %96 = vmatpush.xpose.msra.mxu0 0.0
    %97 = vmatpush.xpose.msra.mxu0 0.0
    %98 = vmatpush.xpose.msra.mxu0 0.0
    %99 = vmatpush.xpose.msra.mxu0 0.0
    %100 = vmatpush.xpose.msra.mxu0 0.0
    %101 = vmatpush.xpose.msra.mxu0 0.0
    %102 = vmatpush.xpose.msra.mxu0 0.0
    %103 = vmatpush.xpose.msra.mxu0 0.0
    %104 = vmatpush.xpose.msra.mxu0 0.0
    %105 = vmatpush.xpose.msra.mxu0 0.0
    %106 = vmatpush.xpose.msra.mxu0 0.0
    %107 = vmatpush.xpose.msra.mxu0 0.0
    %108 = vmatpush.xpose.msra.mxu0 %v44
    %109 = vmatpush.xpose.msra.mxu0 %v40
    %110 = vmatmul.f32.gmra.mxu0 %v40
    %v111 = vpop.f32.mrf.mxu0
    %v112 = vadd.f32 %v89, %v111
    %113 = vmatmul.f32.gmra.mxu0 %v44
    %v114 = vpop.f32.mrf.mxu0
    %v115 = vadd.f32 %v92, %v114
    %116 = vdwg.mxu0
    %117 = vmatpush.xpose.msra.mxu0 0.0
    %118 = vmatpush.xpose.msra.mxu0 0.0
    %119 = vmatpush.xpose.msra.mxu0 0.0
    %120 = vmatpush.xpose.msra.mxu0 0.0
    %121 = vmatpush.xpose.msra.mxu0 0.0
    %122 = vmatpush.xpose.msra.mxu0 0.0
    %123 = vmatpush.xpose.msra.mxu0 0.0
    %124 = vmatpush.xpose.msra.mxu0 0.0
    %125 = vmatpush.xpose.msra.mxu0 0.0
    %126 = vmatpush.xpose.msra.mxu0 0.0
    %127 = vmatpush.xpose.msra.mxu0 0.0
    %128 = vmatpush.xpose.msra.mxu0 0.0
    %129 = vmatpush.xpose.msra.mxu0 0.0
    %130 = vmatpush.xpose.msra.mxu0 0.0
    %131 = vmatpush.xpose.msra.mxu0 %v45
    %132 = vmatpush.xpose.msra.mxu0 %v41
    %133 = vmatmul.f32.gmra.mxu0 %v41
    %v134 = vpop.f32.mrf.mxu0
    %v135 = vadd.f32 %v112, %v134
    %136 = vmatmul.f32.gmra.mxu0 %v45
    %v137 = vpop.f32.mrf.mxu0
    %v138 = vadd.f32 %v115, %v137
    %139 = vdwg.mxu0
    %v140 = vadd.f32 %v46, %v135
    %v141 = vadd.f32 %v47, %v138
    %vm142 = vcmask 130048
    %143 = vst.msk [vmem:[#allocation2] sm:$0xff] %vm142, %v140
    %144 = vst.msk [vmem:[#allocation2 + $0x8] sm:$0xff] %vm142, %v141
    // Predicated region
    $region10: #{gram_matrix.1} parent=1 // pred_check
      %p145 = pneg %p31
    $region11: #{gram_matrix.1} parent=1 // pred_check_branch
      %147 = sbr.rel (%p145) target = $region13
    $region12: #{gram_matrix.1} parent=1 // pred_region
      %v148 = vld [vmem:[#allocation2] sm:$0xff]
      %v149 = vld [vmem:[#allocation2 + $0x8] sm:$0xff]
      %v150 = vmul.f32 %v148, 0.00012207031
      %v151 = vmul.f32 %v149, 0.00012207031
      %152 = vst.msk [vmem:[#allocation2] sm:$0xff] %vm142, %v150
      %153 = vst.msk [vmem:[#allocation2 + $0x8] sm:$0xff] %vm142, %v151
    $region13: #{gram_matrix.1} parent=1 // pred_fallthru
      _
    // Predicated region
    $region14: #{gram_matrix.1} parent=1 // pred_check
      _
    $region15: #{gram_matrix.1} parent=1 // pred_check_branch
      %155 = sbr.rel (0) target = $region17
    $region16: #{gram_matrix.1} parent=1 // pred_region
      %157 = vsyncadd [#allocation3], 0
      %s158 = sshll.u32 [#allocation2], 4
      %s159 = int_to_ptr.vmem [resolvable:$true] %s158
      %s160 = sshll.u32 %s1, 4
      %s161 = int_to_ptr.hbm [resolvable:$true] %s160
      %166 = dma.vmem_to_hbm [thread:$0]  %s159, 256, %s161, [#allocation3], 128, 128, 8
    $region17: #{gram_matrix.1} parent=1 // pred_fallthru
      _
    // Predicated region
    $region18: #{gram_matrix.1} parent=1 // pred_check
      _
    $region19: #{gram_matrix.1} parent=1 // pred_check_branch
      %168 = sbr.rel (0) target = $region21
    $region20: #{gram_matrix.1} parent=1 // pred_region
      %170 = dma.done [#allocation3], 256
    $region21: #{gram_matrix.1} parent=1 // pred_fallthru
      _
    %171 = vsyncpa [#allocation3], 1

</llo_original>
